<compile_context>
chip_gen: v5e
topology: v5e:2x2
jax: 0.10.0
libtpu: 0.0.40
codegen_flags: <defaults>
</compile_context>

<pallas_src>
import functools
import math

import jax
import jax.numpy as jnp
from jax.experimental import pallas as pl
from jax.experimental.pallas import tpu as pltpu


ACT_DTYPE = jnp.bfloat16


# ----------------------------- tiling helpers ------------------------------

def _round_up(x, m):
    return (x + m - 1) // m * m


def _tile(dim, cap):
    """Full dim if it is small, otherwise the cap (dim gets padded to a multiple)."""
    return dim if dim <= cap else cap


def _pad_axis(x, axis, target):
    pad = target - x.shape[axis]
    if pad == 0:
        return x
    widths = [(0, 0)] * x.ndim
    widths[axis] = (0, pad)
    return jnp.pad(x, widths)


# ----------------------------- Pallas kernels ------------------------------

def _matmul_kernel(x_ref, w_ref, b_ref, o_ref, acc_ref, *, activation):
    # grid = (M tiles, N tiles, K tiles); K is the ("arbitrary") reduction axis.
    @pl.when(pl.program_id(2) == 0)
    def _():
        acc_ref[...] = jnp.zeros_like(acc_ref)

    acc_ref[...] += jnp.dot(x_ref[...], w_ref[...],
                            preferred_element_type=jnp.float32)

    @pl.when(pl.program_id(2) == pl.num_programs(2) - 1)
    def _():
        y = acc_ref[...] + b_ref[...].astype(jnp.float32)
        if activation == "relu":
            y = jnp.maximum(y, 0.0)
        o_ref[...] = y.astype(o_ref.dtype)


def linear(x2d, w, b, activation=None, *, out_dtype=None,
           tm_cap=256, tn_cap=256, tk_cap=512):
    """y = act(x @ w + b); x2d: (M, K) bf16, w: (K, N) bf16, b: (N,) f32.

    Ragged M/N/K are padded with zeros to the tile multiple (padding on K is
    exact; padded N columns / M rows are sliced away)."""
    M, K = x2d.shape
    N = w.shape[1]
    if out_dtype is None:
        out_dtype = x2d.dtype

    tm = _tile(M, tm_cap)   # tm_cap multiple of 8
    tn = _tile(N, tn_cap)   # tn_cap multiple of 128
    tk = _tile(K, tk_cap)   # tk_cap multiple of 128
    Mp, Np, Kp = _round_up(M, tm), _round_up(N, tn), _round_up(K, tk)

    xp = _pad_axis(_pad_axis(x2d, 0, Mp), 1, Kp)
    wp = _pad_axis(_pad_axis(w, 0, Kp), 1, Np)
    bp = _pad_axis(b.reshape(1, N), 1, Np)

    out = pl.pallas_call(
        functools.partial(_matmul_kernel, activation=activation),
        out_shape=jax.ShapeDtypeStruct((Mp, Np), out_dtype),
        grid=(Mp // tm, Np // tn, Kp // tk),
        in_specs=[
            pl.BlockSpec((tm, tk), lambda i, j, k: (i, k)),
            pl.BlockSpec((tk, tn), lambda i, j, k: (k, j)),
            pl.BlockSpec((1, tn), lambda i, j, k: (0, j)),
        ],
        out_specs=pl.BlockSpec((tm, tn), lambda i, j, k: (i, j)),
        scratch_shapes=[pltpu.VMEM((tm, tn), jnp.float32)],
        compiler_params=pltpu.CompilerParams(
            dimension_semantics=("parallel", "parallel", "arbitrary")),
    )(xp, wp, bp)

    if Mp != M or Np != N:
        out = out[:M, :N]
    return out


def _ffn_add_ln_kernel(x_ref, w1_ref, b1_ref, w2_ref, b2_ref, g_ref, bt_ref,
                       o_ref, acc_ref, *, eps):
    # LN(x + relu(x @ w1 + b1) @ w2 + b2); d_ff tiled as the reduction axis, so
    # only (D, tf)/(tf, D) weight slices and a (tm, D) f32 accumulator live in VMEM.
    f = pl.program_id(1)

    @pl.when(f == 0)
    def _():
        acc_ref[...] = jnp.zeros_like(acc_ref)

    h = jnp.dot(x_ref[...], w1_ref[...], preferred_element_type=jnp.float32)
    h = jnp.maximum(h + b1_ref[...].astype(jnp.float32), 0.0)
    acc_ref[...] += jnp.dot(h.astype(w2_ref.dtype), w2_ref[...],
                            preferred_element_type=jnp.float32)

    @pl.when(f == pl.num_programs(1) - 1)
    def _():
        # residual add + LayerNorm fused into the finalize (one-pass stats).
        y = acc_ref[...] + b2_ref[...].astype(jnp.float32) \
            + x_ref[...].astype(jnp.float32)
        d = y.shape[-1]
        s = jnp.sum(y, axis=-1, keepdims=True)
        ss = jnp.sum(y * y, axis=-1, keepdims=True)
        mean = s / d
        var = ss / d - mean * mean
        yn = (y - mean) * jax.lax.rsqrt(var + eps)
        o_ref[...] = (yn * g_ref[...] + bt_ref[...]).astype(o_ref.dtype)


def ffn_add_ln(x, p_ffn, p_ln, *, eps=1e-5, tm_cap=256, tf_cap=1024):
    """LayerNorm(x + FFN(x)); x: (B, S, D)."""
    B, S, D = x.shape
    M = B * S
    F = p_ffn["w1"].shape[1]

    tm = _tile(M, tm_cap)
    tf = _tile(F, tf_cap)
    Mp, Fp = _round_up(M, tm), _round_up(F, tf)

    xp = _pad_axis(x.reshape(M, D), 0, Mp)
    w1 = _pad_axis(p_ffn["w1"], 1, Fp)
    b1 = _pad_axis(p_ffn["b1"].reshape(1, F), 1, Fp)
    w2 = _pad_axis(p_ffn["w2"], 0, Fp)
    b2 = p_ffn["b2"].reshape(1, D)
    g = p_ln["gamma"].reshape(1, D)
    bt = p_ln["beta"].reshape(1, D)

    y = pl.pallas_call(
        functools.partial(_ffn_add_ln_kernel, eps=eps),
        out_shape=jax.ShapeDtypeStruct((Mp, D), x.dtype),
        grid=(Mp // tm, Fp // tf),
        in_specs=[
            pl.BlockSpec((tm, D), lambda i, f: (i, 0)),
            pl.BlockSpec((D, tf), lambda i, f: (0, f)),
            pl.BlockSpec((1, tf), lambda i, f: (0, f)),
            pl.BlockSpec((tf, D), lambda i, f: (f, 0)),
            pl.BlockSpec((1, D), lambda i, f: (0, 0)),
            pl.BlockSpec((1, D), lambda i, f: (0, 0)),
            pl.BlockSpec((1, D), lambda i, f: (0, 0)),
        ],
        out_specs=pl.BlockSpec((tm, D), lambda i, f: (i, 0)),
        scratch_shapes=[pltpu.VMEM((tm, D), jnp.float32)],
        compiler_params=pltpu.CompilerParams(
            dimension_semantics=("parallel", "arbitrary")),
    )(xp, w1, b1, w2, b2, g, bt)

    if Mp != M:
        y = y[:M]
    return y.reshape(B, S, D)


def _add_ln_kernel(x_ref, r_ref, g_ref, b_ref, o_ref, *, eps):
    # Fused residual add + layernorm, one-pass statistics, f32 math.
    x = x_ref[...].astype(jnp.float32) + r_ref[...].astype(jnp.float32)
    d = x.shape[-1]
    s = jnp.sum(x, axis=-1, keepdims=True)
    ss = jnp.sum(x * x, axis=-1, keepdims=True)
    mean = s / d
    var = ss / d - mean * mean
    y = (x - mean) * jax.lax.rsqrt(var + eps)
    o_ref[...] = (y * g_ref[...] + b_ref[...]).astype(o_ref.dtype)


def add_layernorm(x, residual, p, eps=1e-5, *, tm_cap=512):
    """LayerNorm(x + residual); both (B, S, D)."""
    B, S, D = x.shape
    M = B * S
    tm = _tile(M, tm_cap)
    Mp = _round_up(M, tm)
    xp = _pad_axis(x.reshape(M, D), 0, Mp)
    rp = _pad_axis(residual.reshape(M, D), 0, Mp)

    y = pl.pallas_call(
        functools.partial(_add_ln_kernel, eps=eps),
        out_shape=jax.ShapeDtypeStruct((Mp, D), x.dtype),
        grid=(Mp // tm,),
        in_specs=[
            pl.BlockSpec((tm, D), lambda i: (i, 0)),
            pl.BlockSpec((tm, D), lambda i: (i, 0)),
            pl.BlockSpec((1, D), lambda i: (0, 0)),
            pl.BlockSpec((1, D), lambda i: (0, 0)),
        ],
        out_specs=pl.BlockSpec((tm, D), lambda i: (i, 0)),
        compiler_params=pltpu.CompilerParams(dimension_semantics=("parallel",)),
    )(xp, rp, p["gamma"].reshape(1, D), p["beta"].reshape(1, D))

    if Mp != M:
        y = y[:M]
    return y.reshape(B, S, D)


def _flash_kernel(q_ref, k_ref, v_ref, o_ref, m_sc, l_sc, acc_sc,
                  *, scale, causal, tq, tk, kv_len):
    # Blocks: (1, H, tq, Dh) / (1, H, tk, Dh); online softmax over KV tiles.
    qi = pl.program_id(1)
    ki = pl.program_id(2)

    @pl.when(ki == 0)
    def _():
        m_sc[...] = jnp.full_like(m_sc[...], -jnp.inf)
        l_sc[...] = jnp.zeros_like(l_sc[...])
        acc_sc[...] = jnp.zeros_like(acc_sc[...])

    q = q_ref[0]                                  # (H, tq, Dh) bf16
    k = k_ref[0]                                  # (H, tk, Dh) bf16
    v = v_ref[0]                                  # (H, tk, Dh) bf16

    s = jnp.einsum('hqd,hkd->hqk', q, k,
                   preferred_element_type=jnp.float32) * scale  # (H, tq, tk)

    k_pos = ki * tk + jax.lax.broadcasted_iota(jnp.int32, s.shape, 2)
    mask = k_pos < kv_len                          # mask padded key positions
    if causal:
        q_pos = qi * tq + jax.lax.broadcasted_iota(jnp.int32, s.shape, 1)
        mask = jnp.logical_and(mask, k_pos <= q_pos)
    s = jnp.where(mask, s, jnp.float32(-1e30))

    m_prev = m_sc[...]
    m_new = jnp.maximum(m_prev, jnp.max(s, axis=-1, keepdims=True))
    alpha = jnp.exp(m_prev - m_new)
    p = jnp.exp(s - m_new)
    p = jnp.where(mask, p, 0.0)

    l_sc[...] = alpha * l_sc[...] + jnp.sum(p, axis=-1, keepdims=True)
    acc_sc[...] = alpha * acc_sc[...] + jnp.einsum(
        'hqk,hkd->hqd', p.astype(v.dtype), v,
        preferred_element_type=jnp.float32)
    m_sc[...] = m_new

    @pl.when(ki == pl.num_programs(2) - 1)
    def _():
        o_ref[0] = (acc_sc[...] *
                    pl.reciprocal(l_sc[...], approx=True)).astype(o_ref.dtype)


def sdpa(q, k, v, causal, *, tq_cap=128, tk_cap=128):
    """q: (B, H, Sq, Dh); k, v: (B, H, Sk, Dh). Flash-style over KV tiles."""
    B, H, Sq, Dh = q.shape
    Sk = k.shape[2]
    scale = 1.0 / math.sqrt(Dh)

    tq = _tile(Sq, tq_cap)
    tk = _tile(Sk, tk_cap)
    Sq_p, Sk_p = _round_up(Sq, tq), _round_up(Sk, tk)
    qp = _pad_axis(q, 2, Sq_p)
    kp = _pad_axis(k, 2, Sk_p)
    vp = _pad_axis(v, 2, Sk_p)

    out = pl.pallas_call(
        functools.partial(_flash_kernel, scale=scale, causal=causal,
                          tq=tq, tk=tk, kv_len=Sk),
        out_shape=jax.ShapeDtypeStruct((B, H, Sq_p, Dh), q.dtype),
        grid=(B, Sq_p // tq, Sk_p // tk),
        in_specs=[
            pl.BlockSpec((1, H, tq, Dh), lambda b, i, j: (b, 0, i, 0)),
            pl.BlockSpec((1, H, tk, Dh), lambda b, i, j: (b, 0, j, 0)),
            pl.BlockSpec((1, H, tk, Dh), lambda b, i, j: (b, 0, j, 0)),
        ],
        out_specs=pl.BlockSpec((1, H, tq, Dh), lambda b, i, j: (b, 0, i, 0)),
        scratch_shapes=[
            pltpu.VMEM((H, tq, 1), jnp.float32),
            pltpu.VMEM((H, tq, 1), jnp.float32),
            pltpu.VMEM((H, tq, Dh), jnp.float32),
        ],
        compiler_params=pltpu.CompilerParams(
            dimension_semantics=("parallel", "parallel", "arbitrary")),
    )(qp, kp, vp)

    if Sq_p != Sq:
        out = out[:, :, :Sq, :]
    return out


# ----------------------------- Model wrappers -------------------------------

def _split_heads(x2d, B, S, H, Dh):
    # (B*S, D) -> (B, H, S, Dh).  TODO(synk): fuse into the kernels for prod.
    return x2d.reshape(B, S, H, Dh).transpose(0, 2, 1, 3)


def mha_self(x, p, num_heads, causal):
    B, S, D = x.shape
    Dh = D // num_heads
    qkv = linear(x.reshape(B * S, D), p["wqkv"], p["bqkv"])   # fused QKV matmul
    q2d, k2d, v2d = jnp.split(qkv, 3, axis=-1)
    q = _split_heads(q2d, B, S, num_heads, Dh)
    k = _split_heads(k2d, B, S, num_heads, Dh)
    v = _split_heads(v2d, B, S, num_heads, Dh)
    o = sdpa(q, k, v, causal)                                  # (B, H, S, Dh)
    o = o.transpose(0, 2, 1, 3).reshape(B * S, D)
    o = linear(o, p["wo"], p["bo"])
    return o.reshape(B, S, D)


def mha_cross(x, memory, p, num_heads):
    B, Sq, D = x.shape
    Sk = memory.shape[1]
    Dh = D // num_heads
    q2d = linear(x.reshape(B * Sq, D), p["wq"], p["bq"])
    kv = linear(memory.reshape(B * Sk, D), p["wkv"], p["bkv"])  # fused KV matmul
    k2d, v2d = jnp.split(kv, 2, axis=-1)
    q = _split_heads(q2d, B, Sq, num_heads, Dh)
    k = _split_heads(k2d, B, Sk, num_heads, Dh)
    v = _split_heads(v2d, B, Sk, num_heads, Dh)
    o = sdpa(q, k, v, causal=False)
    o = o.transpose(0, 2, 1, 3).reshape(B * Sq, D)
    o = linear(o, p["wo"], p["bo"])
    return o.reshape(B, Sq, D)


def positional_encoding(max_len, d_model):
    pos = jnp.arange(max_len, dtype=jnp.float32)[:, None]
    i = jnp.arange(0, d_model, 2, dtype=jnp.float32)[None, :]
    angle = pos / jnp.power(10000.0, i / d_model)
    pe = jnp.zeros((max_len, d_model), dtype=jnp.float32)
    pe = pe.at[:, 0::2].set(jnp.sin(angle))
    pe = pe.at[:, 1::2].set(jnp.cos(angle[:, : d_model // 2]))  # odd-D safe
    return pe


def _embed(ids, emb, pe, D):
    x = emb[ids].astype(jnp.float32) * math.sqrt(D) + pe[: ids.shape[1]]
    return x.astype(ACT_DTYPE)


def encoder_forward(src_ids, params, num_heads):
    D = params["emb"].shape[1]
    x = _embed(src_ids, params["emb"], params["pe"], D)
    for layer in params["layers"]:
        attn = mha_self(x, layer["self_attn"], num_heads, causal=False)
        x = add_layernorm(x, attn, layer["ln1"])
        x = ffn_add_ln(x, layer["ffn"], layer["ln2"])
    return x


def decoder_forward(tgt_ids, memory, params, num_heads):
    D = params["emb"].shape[1]
    x = _embed(tgt_ids, params["emb"], params["pe"], D)
    for layer in params["layers"]:
        sa = mha_self(x, layer["self_attn"], num_heads, causal=True)
        x = add_layernorm(x, sa, layer["ln1"])
        ca = mha_cross(x, memory, layer["cross_attn"], num_heads)
        x = add_layernorm(x, ca, layer["ln2"])
        x = ffn_add_ln(x, layer["ffn"], layer["ln3"])
    return x


def transformer_forward(src_ids, tgt_ids, params, num_heads):
    memory = encoder_forward(src_ids, params["encoder"], num_heads)
    out = decoder_forward(tgt_ids, memory, params["decoder"], num_heads)
    B, S, D = out.shape
    # Vocab projection: N is tiled (256-wide lane-dense tiles) so a large
    # vocabulary streams through VMEM instead of becoming one giant block.
    logits = linear(out.reshape(B * S, D), params["out_w"], params["out_b"],
                    out_dtype=jnp.float32)
    return logits.reshape(B, S, -1)


# ----------------------------- Parameter init -------------------------------

def _w(key, shape):
    return (jax.random.normal(key, shape, jnp.float32) * 0.02).astype(ACT_DTYPE)


def _init_mha_self(key, D):
    kqkv, ko = jax.random.split(key)
    return {
        "wqkv": _w(kqkv, (D, 3 * D)), "bqkv": jnp.zeros((3 * D,), jnp.float32),
        "wo": _w(ko, (D, D)), "bo": jnp.zeros((D,), jnp.float32),
    }


def _init_mha_cross(key, D):
    kq, kkv, ko = jax.random.split(key, 3)
    return {
        "wq": _w(kq, (D, D)), "bq": jnp.zeros((D,), jnp.float32),
        "wkv": _w(kkv, (D, 2 * D)), "bkv": jnp.zeros((2 * D,), jnp.float32),
        "wo": _w(ko, (D, D)), "bo": jnp.zeros((D,), jnp.float32),
    }


def _init_ln(D):
    return {"gamma": jnp.ones((D,), jnp.float32),
            "beta": jnp.zeros((D,), jnp.float32)}


def _init_ffn(key, D, d_ff):
    k1, k2 = jax.random.split(key)
    return {
        "w1": _w(k1, (D, d_ff)), "b1": jnp.zeros((d_ff,), jnp.float32),
        "w2": _w(k2, (d_ff, D)), "b2": jnp.zeros((D,), jnp.float32),
    }


def init_params(key, src_vocab, tgt_vocab, D, d_ff, n_layers, max_len):
    keys = iter(jax.random.split(key, 8 + 6 * n_layers))
    pe = positional_encoding(max_len, D)

    enc_layers = []
    for _ in range(n_layers):
        enc_layers.append({
            "self_attn": _init_mha_self(next(keys), D),
            "ffn": _init_ffn(next(keys), D, d_ff),
            "ln1": _init_ln(D), "ln2": _init_ln(D),
        })
    dec_layers = []
    for _ in range(n_layers):
        dec_layers.append({
            "self_attn": _init_mha_self(next(keys), D),
            "cross_attn": _init_mha_cross(next(keys), D),
            "ffn": _init_ffn(next(keys), D, d_ff),
            "ln1": _init_ln(D), "ln2": _init_ln(D), "ln3": _init_ln(D),
        })

    return {
        "encoder": {"emb": _w(next(keys), (src_vocab, D)), "pe": pe,
                    "layers": enc_layers},
        "decoder": {"emb": _w(next(keys), (tgt_vocab, D)), "pe": pe,
                    "layers": dec_layers},
        "out_w": _w(next(keys), (D, tgt_vocab)),
        "out_b": jnp.zeros((tgt_vocab,), jnp.float32),
    }


# ---------------------------------- main ------------------------------------

if __name__ == "__main__":
    SRC_VOCAB, TGT_VOCAB = 64, 64
    MODEL_DIM, NUM_HEADS = 32, 4
    SRC_SEQ, TGT_SEQ = 8, 8
    MAX_LEN = 16
    D_FF = 64
    N_LAYERS = 2
    BATCH = 2

    key = jax.random.PRNGKey(0)
    pkey, skey, tkey = jax.random.split(key, 3)

    params = init_params(pkey, SRC_VOCAB, TGT_VOCAB, MODEL_DIM, D_FF,
                         N_LAYERS, MAX_LEN)
    src = jax.random.randint(skey, (BATCH, SRC_SEQ), 0, SRC_VOCAB, dtype=jnp.int32)
    tgt = jax.random.randint(tkey, (BATCH, TGT_SEQ), 0, TGT_VOCAB, dtype=jnp.int32)

    logits = transformer_forward(src, tgt, params, NUM_HEADS)
    logits = jax.block_until_ready(logits)

    assert logits.shape == (BATCH, TGT_SEQ, TGT_VOCAB), logits.shape
    assert bool(jnp.all(jnp.isfinite(logits)))
    print("KERNEL_OK")
</pallas_src>

<mosaic_0001>
module attributes {stable_mosaic.version = 11 : i64} {
  func.func @_matmul_kernel(%arg0: i32, %arg1: i32, %arg2: i32, %arg3: memref<16x32xbf16, #tpu.memory_space<vmem>>, %arg4: memref<32x96xbf16, #tpu.memory_space<vmem>>, %arg5: memref<1x96xf32, #tpu.memory_space<vmem>>, %arg6: memref<16x96xbf16, #tpu.memory_space<vmem>>, %arg7: memref<16x96xf32, #tpu.memory_space<vmem>>) attributes {dimension_semantics = [#tpu.dimension_semantics<parallel>, #tpu.dimension_semantics<parallel>, #tpu.dimension_semantics<arbitrary>], iteration_bounds = array<i64: 1, 1, 1>, scalar_prefetch = 0 : i64, scratch_operands = 1 : i64, tpu.core_type = #tpu.core_type<tc>, window_params = [{transform_indices = @transform_0, window_bounds = array<i64: 16, 32>}, {transform_indices = @transform_1, window_bounds = array<i64: 32, 96>}, {transform_indices = @transform_2, window_bounds = array<i64: 1, 96>}, {transform_indices = @transform_3, window_bounds = array<i64: 16, 96>}]} {
    %c0_i32 = arith.constant 0 : i32
    %0 = arith.cmpi eq, %arg2, %c0_i32 : i32
    %1 = arith.extui %0 : i1 to i32
    %c0_i32_0 = arith.constant 0 : i32
    %2 = arith.cmpi ne, %1, %c0_i32_0 : i32
    scf.if %2 {
      %cst_10 = arith.constant 0.000000e+00 : f32
      %12 = vector.broadcast %cst_10 : f32 to vector<16x96xf32>
      %c0_11 = arith.constant 0 : index
      %c0_12 = arith.constant 0 : index
      %13 = vector.load %arg7[%c0_11, %c0_12] : memref<16x96xf32, #tpu.memory_space<vmem>>, vector<16x96xf32>
      tpu.vector_store %arg7[%c0_11, %c0_12], %12 {strides = array<i32>} : memref<16x96xf32, #tpu.memory_space<vmem>>, vector<16x96xf32>,
    } else {
    }
    %c0 = arith.constant 0 : index
    %c0_1 = arith.constant 0 : index
    %3 = vector.load %arg7[%c0, %c0_1] : memref<16x96xf32, #tpu.memory_space<vmem>>, vector<16x96xf32>
    %c0_2 = arith.constant 0 : index
    %c0_3 = arith.constant 0 : index
    %4 = vector.load %arg3[%c0_2, %c0_3] : memref<16x32xbf16, #tpu.memory_space<vmem>>, vector<16x32xbf16>
    %c0_4 = arith.constant 0 : index
    %c0_5 = arith.constant 0 : index
    %5 = vector.load %arg4[%c0_4, %c0_5] : memref<32x96xbf16, #tpu.memory_space<vmem>>, vector<32x96xbf16>
    %cst = arith.constant dense<0.000000e+00> : vector<16x96xf32>
    %6 = tpu.matmul %4, %5, %cst {dimension_numbers = #tpu.dot_dimension_numbers<[1], [0], [0], [1], [0, 0, 1, 1], [], []>} : vector<16x32xbf16>, vector<32x96xbf16>, vector<16x96xf32> -> vector<16x96xf32>
    %7 = arith.addf %3, %6 : vector<16x96xf32>
    %c0_6 = arith.constant 0 : index
    %c0_7 = arith.constant 0 : index
    %8 = vector.load %arg7[%c0_6, %c0_7] : memref<16x96xf32, #tpu.memory_space<vmem>>, vector<16x96xf32>
    tpu.vector_store %arg7[%c0_6, %c0_7], %7 {strides = array<i32>} : memref<16x96xf32, #tpu.memory_space<vmem>>, vector<16x96xf32>,
    %c0_i32_8 = arith.constant 0 : i32
    %9 = arith.cmpi eq, %arg2, %c0_i32_8 : i32
    %10 = arith.extui %9 : i1 to i32
    %c0_i32_9 = arith.constant 0 : i32
    %11 = arith.cmpi ne, %10, %c0_i32_9 : i32
    scf.if %11 {
      %c0_10 = arith.constant 0 : index
      %c0_11 = arith.constant 0 : index
      %12 = vector.load %arg7[%c0_10, %c0_11] : memref<16x96xf32, #tpu.memory_space<vmem>>, vector<16x96xf32>
      %c0_12 = arith.constant 0 : index
      %c0_13 = arith.constant 0 : index
      %13 = vector.load %arg5[%c0_12, %c0_13] : memref<1x96xf32, #tpu.memory_space<vmem>>, vector<1x96xf32>
      %14 = vector.broadcast %13 : vector<1x96xf32> to vector<16x96xf32>
      %15 = arith.addf %12, %14 : vector<16x96xf32>
      %16 = arith.truncf %15 : vector<16x96xf32> to vector<16x96xbf16>
      %c0_14 = arith.constant 0 : index
      %c0_15 = arith.constant 0 : index
      %17 = vector.load %arg6[%c0_14, %c0_15] : memref<16x96xbf16, #tpu.memory_space<vmem>>, vector<16x96xbf16>
      tpu.vector_store %arg6[%c0_14, %c0_15], %16 {strides = array<i32>} : memref<16x96xbf16, #tpu.memory_space<vmem>>, vector<16x96xbf16>,
    } else {
    }
    return
  }
  func.func @transform_0(%arg0: i32, %arg1: i32, %arg2: i32) -> (i32, i32) {
    %c0_i32 = arith.constant 0 : i32
    return %arg0, %arg2 : i32, i32
  }
  func.func @transform_1(%arg0: i32, %arg1: i32, %arg2: i32) -> (i32, i32) {
    %c0_i32 = arith.constant 0 : i32
    return %arg2, %arg1 : i32, i32
  }
  func.func @transform_2(%arg0: i32, %arg1: i32, %arg2: i32) -> (i32, i32) {
    %c0_i32 = arith.constant 0 : i32
    %c0_i32_0 = arith.constant 0 : i32
    return %c0_i32, %arg1 : i32, i32
  }
  func.func @transform_3(%arg0: i32, %arg1: i32, %arg2: i32) -> (i32, i32) {
    %c0_i32 = arith.constant 0 : i32
    return %arg0, %arg1 : i32, i32
  }
}

</mosaic_0001>

<llo_original>
// kernel: tpu_custom_call.1
$region0: #{tpu_custom_call.1}
  #allocation0 [shape = 'u32[]', space=smem, size = 0x4, offset = 0x4, fixed_abs, tag = 'smem constant byte address 0x4 - core index']
  #allocation1 [shape = 'u32[72,128]{1,0:T(1,128)}', space=vmem, size = 0x9000, scoped, tag = 'internal scratch']
  #allocation2 [shape = 'f32[16,96]{1,0:T(8,128)}', space=vmem, size = 0x2000, scoped, tag = 'scratch operand']
  %s0 = inlined_call_operand.hbm [shape: bf16[16,32], index: 0, kind: input, shape index: {}]
  %s1 = inlined_call_operand.hbm [shape: bf16[32,96], index: 1, kind: input, shape index: {}]
  %s2 = inlined_call_operand.vmem [shape: f32[1,96], index: 2, kind: input, shape index: {}]
  %s3 = inlined_call_operand.hbm [shape: bf16[16,96], index: 3, kind: output, shape index: {}]
  %s4 = sld [smem:[#allocation0]]
  $region38: #{tpu_custom_call.1} parent=0
    _
  %s6 = ssub.s32 1, %s4
  %s7 = scalar_select 0, %s6, %s4
  $region1: #{tpu_custom_call.1} parent=0
    #allocation3 [shape = 'u8[4096]{0}', space=vmem, size = 0x1000, scoped, tag = 'input window, operand 0, single buffered']
    #allocation4 [shape = 's32[1]{0}', space=sflag, size = 0x4, scoped, tag = 'scoped memory for tpu_custom_call.1']
    #allocation5 [shape = 's32[1]{0}', space=sflag, size = 0x4, scoped, tag = 'scoped memory for tpu_custom_call.1']
    #allocation6 [shape = 'u8[8192]{0}', space=vmem, size = 0x2000, scoped, tag = 'input window, operand 1, single buffered']
    #allocation7 [shape = 's32[1]{0}', space=sflag, size = 0x4, scoped, tag = 'scoped memory for tpu_custom_call.1']
    #allocation8 [shape = 'u8[4096]{0}', space=vmem, size = 0x1000, scoped, tag = 'output window, operand 0, single buffered']
    %8 = vsyncpa [#allocation4], 0
    %9 = vsyncpa [#allocation7], 0
    %10 = vsyncpa [#allocation5], 0
    // Predicated region
    $region2: #{tpu_custom_call.1} parent=1 // pred_check
      _
    $region3: #{tpu_custom_call.1} parent=1 // pred_check_branch
      %12 = sbr.rel (0) target = $region5
    $region4: #{tpu_custom_call.1} parent=1 // pred_region
      %14 = vsyncadd [#allocation4], 0
      %s15 = sshll.u32 %s0, 4
      %s16 = int_to_ptr.hbm [resolvable:$true] %s15
      %s17 = sshll.u32 [#allocation3], 4
      %s18 = int_to_ptr.vmem [resolvable:$true] %s17
      %23 = dma.hbm_to_vmem [thread:$0]  %s16, 128, %s18, [#allocation4], 64, 64, 4
    $region5: #{tpu_custom_call.1} parent=1 // pred_fallthru
      _
    // Predicated region
    $region6: #{tpu_custom_call.1} parent=1 // pred_check
      _
    $region7: #{tpu_custom_call.1} parent=1 // pred_check_branch
      %25 = sbr.rel (0) target = $region9
    $region8: #{tpu_custom_call.1} parent=1 // pred_region
      %27 = vsyncadd [#allocation7], 0
      %s28 = sshll.u32 %s1, 4
      %s29 = int_to_ptr.hbm [resolvable:$true] %s28
      %s30 = sshll.u32 [#allocation6], 4
      %s31 = int_to_ptr.vmem [resolvable:$true] %s30
      %36 = dma.hbm_to_vmem [thread:$0]  %s29, 256, %s31, [#allocation7], 64, 64, 4
    $region9: #{tpu_custom_call.1} parent=1 // pred_fallthru
      _
    // Predicated region
    $region10: #{tpu_custom_call.1} parent=1 // pred_check
      _
    $region11: #{tpu_custom_call.1} parent=1 // pred_check_branch
      %38 = sbr.rel (0) target = $region13
    $region12: #{tpu_custom_call.1} parent=1 // pred_region
      _
    $region13: #{tpu_custom_call.1} parent=1 // pred_fallthru
      _
    // Predicated region
    $region14: #{tpu_custom_call.1} parent=1 // pred_check
      _
    $region15: #{tpu_custom_call.1} parent=1 // pred_check_branch
      %40 = sbr.rel (0) target = $region17
    $region16: #{tpu_custom_call.1} parent=1 // pred_region
      %42 = dma.done [#allocation4], 128
    $region17: #{tpu_custom_call.1} parent=1 // pred_fallthru
      _
    // Predicated region
    $region18: #{tpu_custom_call.1} parent=1 // pred_check
      _
    $region19: #{tpu_custom_call.1} parent=1 // pred_check_branch
      %44 = sbr.rel (0) target = $region21
    $region20: #{tpu_custom_call.1} parent=1 // pred_region
      %46 = dma.done [#allocation7], 256
    $region21: #{tpu_custom_call.1} parent=1 // pred_fallthru
      _
    %p48 = scmp.eq.s32.totalorder 0, 0
    // Predicated region
    $region22: #{tpu_custom_call.1} parent=1 // pred_check
      %p49 = pneg %p48
    $region23: #{tpu_custom_call.1} parent=1 // pred_check_branch
      %51 = sbr.rel (%p49) target = $region25
    $region24: #{tpu_custom_call.1} parent=1 // pred_region
      %vm52 = vcmask 785408
      %53 = vst.msk [vmem:[#allocation2] sm:$0xff] %vm52, 0.0
      %54 = vst.msk [vmem:[#allocation2 + $0x8] sm:$0xff] %vm52, 0.0
    $region25: #{tpu_custom_call.1} parent=1 // pred_fallthru
      _
    %v55 = vld [vmem:[#allocation2] sm:$0xff]
    %v56 = vld [vmem:[#allocation2 + $0x8] sm:$0xff]
    %v57 = vld [vmem:[#allocation3] sm:$0xf]
    %v58 = vld [vmem:[#allocation3 + $0x4] sm:$0xf]
    %v59 = vld [vmem:[#allocation6] sm:$0xf]
    %v60 = vld [vmem:[#allocation6 + $0x4] sm:$0xf]
    %v61 = vld [vmem:[#allocation6 + $0x8] sm:$0xf]
    %v62 = vld [vmem:[#allocation6 + $0xc] sm:$0xf]
    %v65 = vunpack.c.l.b16 %v57
    %v66 = vunpack.c.l.b16 %v58
    %v67 = vpack.c.b16 %v66, %v65
    %v72 = vunpack.c.l.b16 %v59
    %v73 = vunpack.c.l.b16 %v60
    %v74 = vunpack.c.l.b16 %v61
    %v75 = vunpack.c.l.b16 %v62
    %v76 = vpack.c.b16 %v73, %v72
    %v77 = vpack.c.b16 %v75, %v74
    %vm80 = vcmask 261120
    %v82 = vsel %vm80, %v67, 0
    %84 = vmatpush.bf16.msra.mxu0 0
    %85 = vmatpush.bf16.msra.mxu0 0
    %86 = vmatpush.bf16.msra.mxu0 0
    %87 = vmatpush.bf16.msra.mxu0 0
    %88 = vmatpush.bf16.msra.mxu0 0
    %89 = vmatpush.bf16.msra.mxu0 0
    %90 = vmatpush.bf16.msra.mxu0 %v77
    %91 = vmatpush.bf16.msra.mxu0 %v76
    %92 = vmatmul.bf16.gmra.mxu0 %v82
    %v93 = vpop.f32.mrf.mxu0
    %v94 = vadd.f32 0.0, %v93
    %v95 = vpop.f32.mrf.mxu0
    %v96 = vadd.f32 0.0, %v95
    %97 = vdwg.mxu0
    %v98 = vadd.f32 %v55, %v94
    %v99 = vadd.f32 %v56, %v96
    %vm100 = vcmask 785408
    %101 = vst.msk [vmem:[#allocation2] sm:$0xff] %vm100, %v98
    %102 = vst.msk [vmem:[#allocation2 + $0x8] sm:$0xff] %vm100, %v99
    // Predicated region
    $region26: #{tpu_custom_call.1} parent=1 // pred_check
      %p103 = pneg %p48
    $region27: #{tpu_custom_call.1} parent=1 // pred_check_branch
      %105 = sbr.rel (%p103) target = $region29
    $region28: #{tpu_custom_call.1} parent=1 // pred_region
      %v106 = vld [vmem:[#allocation2] sm:$0xff]
      %v107 = vld [vmem:[#allocation2 + $0x8] sm:$0xff]
      %v108 = vld [vmem:[%s2] sm:$0x1]
      %v110 = vperm.slane %v108, 0
      %v112 = vadd.f32 %v106, %v110
      %v113 = vadd.f32 %v107, %v110
      %v114 = vpack.c.bf16 %v112, %v112
      %v115 = vpack.c.bf16 %v113, %v113
      %vm116 = vcmask 781312
      %117 = vst.msk [vmem:[#allocation8] sm:$0xf] %vm116, %v114
      %118 = vst.msk [vmem:[#allocation8 + $0x4] sm:$0xf] %vm116, %v115
    $region29: #{tpu_custom_call.1} parent=1 // pred_fallthru
      _
    // Predicated region
    $region30: #{tpu_custom_call.1} parent=1 // pred_check
      _
    $region31: #{tpu_custom_call.1} parent=1 // pred_check_branch
      %120 = sbr.rel (0) target = $region33
    $region32: #{tpu_custom_call.1} parent=1 // pred_region
      %122 = vsyncadd [#allocation5], 0
      %s123 = sshll.u32 [#allocation8], 4
      %s124 = int_to_ptr.vmem [resolvable:$true] %s123
      %s125 = sshll.u32 %s3, 4
      %s126 = int_to_ptr.hbm [resolvable:$true] %s125
      %131 = dma.vmem_to_hbm [thread:$0]  %s124, 128, %s126, [#allocation5], 64, 64, 4
    $region33: #{tpu_custom_call.1} parent=1 // pred_fallthru
      _
    // Predicated region
    $region34: #{tpu_custom_call.1} parent=1 // pred_check
      _
    $region35: #{tpu_custom_call.1} parent=1 // pred_check_branch
      %133 = sbr.rel (0) target = $region37
    $region36: #{tpu_custom_call.1} parent=1 // pred_region
      %135 = dma.done [#allocation5], 128
    $region37: #{tpu_custom_call.1} parent=1 // pred_fallthru
      _
    %136 = vsyncpa [#allocation4], 1
    %137 = vsyncpa [#allocation7], 1
    %138 = vsyncpa [#allocation5], 1

</llo_original>
